<compile_context>
chip_gen: v5e
topology: v5e:2x2
jax: 0.10.0
libtpu: 0.0.40
codegen_flags: <defaults>
</compile_context>

<pallas_src>
import functools
import math

import jax
import jax.numpy as jnp
from jax import lax
from jax.experimental import pallas as pl
from jax.experimental.pallas import tpu as pltpu

_LANES = 128
_LOG_2PI_HALF = math.log(2.0 * math.pi) / 2.0


def _round_up(x, m):
    return ((x + m - 1) // m) * m


def _du_loss_kernel(scalars_ref, pred_ref, va_ref, tgt_ref, out_ref, *,
                    n_valid, block_rows, tiles_per_split):
    si = pl.program_id(0)   # parallel split
    ti = pl.program_id(1)   # accumulation step within the split

    @pl.when(ti == 0)
    def _():
        out_ref[...] = jnp.zeros_like(out_ref)

    # scalar-prefetched constants (SMEM): [min_num, 1/(max_num - min_num)]
    min_num = scalars_ref[0]
    inv_range = scalars_ref[1]

    pred = pred_ref[...]          # (block_rows, 128) f32
    va = va_ref[...]              # (block_rows, 128) f32
    tgt = tgt_ref[...]            # (block_rows, 128) f32

    tgt_n = (jnp.log(tgt + 1.0) - min_num) * inv_range
    diff = pred - tgt_n
    # 0.5 factor, /N and +log(2*pi)/2 are folded out to the wrapper finalize.
    term = jnp.log(va) + (diff * diff) * pl.reciprocal(va, approx=True)

    # mask out tail padding (padded va==1, tgt==0, pred==0 -> finite term)
    row_ids = lax.broadcasted_iota(jnp.int32, (block_rows, _LANES), 0)
    lane_ids = lax.broadcasted_iota(jnp.int32, (block_rows, _LANES), 1)
    tile_row0 = (si * tiles_per_split + ti) * block_rows
    gidx = (tile_row0 + row_ids) * _LANES + lane_ids
    term = jnp.where(gidx < n_valid, term, 0.0)

    out_ref[...] += term


def data_uncertainty_loss(pred, va, targets, max_num, min_num, *,
                          block_rows=512, num_splits=2):
    """JAX wrapper around the Pallas kernel.  Returns the scalar mean loss."""
    n = targets.shape[0]
    pred_f = jnp.reshape(pred, (n,)).astype(jnp.float32)   # torch reshape(len(targets))
    va_f = jnp.reshape(va, (n,)).astype(jnp.float32)
    tgt_f = jnp.reshape(targets, (n,)).astype(jnp.float32)

    # choose a sublane-dense tiling: (block_rows, 128) f32 tiles
    rows_needed = -(-n // _LANES)
    br_cap = max(8, (block_rows // 8) * 8)
    br = min(br_cap, _round_up(rows_needed, 8))
    total_tiles = -(-rows_needed // br)
    s = max(1, min(num_splits, total_tiles))      # parallel splits (v7x: 2 TCs)
    t = -(-total_tiles // s)                      # tiles per split
    padded_rows = s * t * br
    pad = padded_rows * _LANES - n

    pred_p = jnp.pad(pred_f, (0, pad)).reshape(padded_rows, _LANES)
    va_p = jnp.pad(va_f, (0, pad), constant_values=1.0).reshape(padded_rows, _LANES)
    tgt_p = jnp.pad(tgt_f, (0, pad)).reshape(padded_rows, _LANES)

    min32 = jnp.asarray(min_num, jnp.float32)
    max32 = jnp.asarray(max_num, jnp.float32)
    inv_range = jnp.float32(1.0) / (max32 - min32)
    scalars = jnp.stack([min32, inv_range])

    kernel = functools.partial(_du_loss_kernel, n_valid=n,
                               block_rows=br, tiles_per_split=t)

    def _in_spec():
        return pl.BlockSpec((br, _LANES), lambda si, ti, sc: (si * t + ti, 0))

    partial = pl.pallas_call(
        kernel,
        out_shape=jax.ShapeDtypeStruct((s * br, _LANES), jnp.float32),
        grid_spec=pltpu.PrefetchScalarGridSpec(
            num_scalar_prefetch=1,
            grid=(s, t),
            in_specs=[_in_spec(), _in_spec(), _in_spec()],
            # output block depends only on the split -> resident accumulator
            out_specs=pl.BlockSpec((br, _LANES), lambda si, ti, sc: (si, 0)),
        ),
        compiler_params=pltpu.CompilerParams(
            dimension_semantics=("parallel", "arbitrary")),
    )(scalars, pred_p, va_p, tgt_p)

    # single final reduction + folded constants
    total = jnp.sum(partial)
    return 0.5 * total / n + _LOG_2PI_HALF


def _reference(pred, va, targets, max_num, min_num):
    n = targets.shape[0]
    tgt = (jnp.log(targets.astype(jnp.float32) + 1.0) - min_num) / (max_num - min_num)
    p = jnp.reshape(pred, (n,)).astype(jnp.float32)
    v = va.astype(jnp.float32)
    loss = jnp.log(v) / 2.0 + jnp.square(p - tgt) / (2.0 * v) + _LOG_2PI_HALF
    return jnp.mean(loss)


if __name__ == "__main__":
    # Case 1: small batch, length not a multiple of 128 (exercises pad + mask).
    k1, k2, k3 = jax.random.split(jax.random.PRNGKey(0), 3)
    N1 = 300
    pred1 = jax.random.normal(k1, (N1, 1), dtype=jnp.float32)
    va1 = jax.random.uniform(k2, (N1,), jnp.float32, 0.1, 1.0)
    tgt1 = jax.random.uniform(k3, (N1,), jnp.float32, 0.0, 5.0)
    out1 = jax.block_until_ready(data_uncertainty_loss(pred1, va1, tgt1, 2.0, 0.0))
    ref1 = _reference(pred1, va1, tgt1, 2.0, 0.0)
    assert jnp.allclose(out1, ref1, rtol=5e-3, atol=5e-3), (out1, ref1)

    # Case 2: multi-tile grid (2 parallel splits x 2 accumulation steps).
    k4, k5, k6 = jax.random.split(jax.random.PRNGKey(1), 3)
    N2 = 4000
    pred2 = jax.random.normal(k4, (N2,), dtype=jnp.float32)
    va2 = jax.random.uniform(k5, (N2,), jnp.float32, 0.05, 2.0)
    tgt2 = jax.random.uniform(k6, (N2,), jnp.float32, 0.0, 10.0)
    out2 = jax.block_until_ready(
        data_uncertainty_loss(pred2, va2, tgt2, 3.0, 0.5, block_rows=8))
    ref2 = _reference(pred2, va2, tgt2, 3.0, 0.5)
    assert jnp.allclose(out2, ref2, rtol=5e-3, atol=5e-3), (out2, ref2)

    print("KERNEL_OK")
</pallas_src>

<mosaic_0001>
module attributes {stable_mosaic.version = 11 : i64} {
  func.func @_du_loss_kernel(%arg0: i32, %arg1: i32, %arg2: memref<2xf32, #tpu.memory_space<smem>>, %arg3: memref<8x128xf32, #tpu.memory_space<vmem>>, %arg4: memref<8x128xf32, #tpu.memory_space<vmem>>, %arg5: memref<8x128xf32, #tpu.memory_space<vmem>>, %arg6: memref<8x128xf32, #tpu.memory_space<vmem>>) attributes {dimension_semantics = [#tpu.dimension_semantics<parallel>, #tpu.dimension_semantics<arbitrary>], iteration_bounds = array<i64: 1, 1>, scalar_prefetch = 1 : i64, scratch_operands = 0 : i64, tpu.core_type = #tpu.core_type<tc>, window_params = [{transform_indices = @transform_0, window_bounds = array<i64: 8, 128>}, {transform_indices = @transform_1, window_bounds = array<i64: 8, 128>}, {transform_indices = @transform_2, window_bounds = array<i64: 8, 128>}, {transform_indices = @transform_3, window_bounds = array<i64: 8, 128>}]} {
    %c0_i32 = arith.constant 0 : i32
    %0 = arith.cmpi eq, %arg1, %c0_i32 : i32
    %1 = arith.extui %0 : i1 to i32
    %c0_i32_0 = arith.constant 0 : i32
    %2 = arith.cmpi ne, %1, %c0_i32_0 : i32
    scf.if %2 {
      %cst_12 = arith.constant 0.000000e+00 : f32
      %38 = vector.broadcast %cst_12 : f32 to vector<8x128xf32>
      %c0_13 = arith.constant 0 : index
      %c0_14 = arith.constant 0 : index
      %39 = vector.load %arg6[%c0_13, %c0_14] : memref<8x128xf32, #tpu.memory_space<vmem>>, vector<8x128xf32>
      tpu.vector_store %arg6[%c0_13, %c0_14], %38 {strides = array<i32>} : memref<8x128xf32, #tpu.memory_space<vmem>>, vector<8x128xf32>,
    } else {
    }
    %c0 = arith.constant 0 : index
    %3 = memref.load %arg2[%c0] : memref<2xf32, #tpu.memory_space<smem>>
    %c1 = arith.constant 1 : index
    %4 = memref.load %arg2[%c1] : memref<2xf32, #tpu.memory_space<smem>>
    %c0_1 = arith.constant 0 : index
    %c0_2 = arith.constant 0 : index
    %5 = vector.load %arg3[%c0_1, %c0_2] : memref<8x128xf32, #tpu.memory_space<vmem>>, vector<8x128xf32>
    %c0_3 = arith.constant 0 : index
    %c0_4 = arith.constant 0 : index
    %6 = vector.load %arg4[%c0_3, %c0_4] : memref<8x128xf32, #tpu.memory_space<vmem>>, vector<8x128xf32>
    %c0_5 = arith.constant 0 : index
    %c0_6 = arith.constant 0 : index
    %7 = vector.load %arg5[%c0_5, %c0_6] : memref<8x128xf32, #tpu.memory_space<vmem>>, vector<8x128xf32>
    %cst = arith.constant 1.000000e+00 : f32
    %8 = vector.broadcast %cst : f32 to vector<8x128xf32>
    %9 = arith.addf %7, %8 : vector<8x128xf32>
    %10 = math.log %9 : vector<8x128xf32>
    %11 = vector.broadcast %3 : f32 to vector<8x128xf32>
    %12 = arith.subf %10, %11 : vector<8x128xf32>
    %13 = vector.broadcast %4 : f32 to vector<8x128xf32>
    %14 = arith.mulf %12, %13 : vector<8x128xf32>
    %15 = arith.subf %5, %14 : vector<8x128xf32>
    %16 = math.log %6 : vector<8x128xf32>
    %17 = arith.mulf %15, %15 : vector<8x128xf32>
    %18 = tpu.reciprocal %6 {approx = true} : vector<8x128xf32> -> vector<8x128xf32>
    %19 = arith.mulf %17, %18 : vector<8x128xf32>
    %20 = arith.addf %16, %19 : vector<8x128xf32>
    %21 = tpu.iota {dimensions = array<i32: 0>} : vector<8x128xi32>
    %22 = tpu.iota {dimensions = array<i32: 1>} : vector<8x128xi32>
    %c1_i32 = arith.constant 1 : i32
    %23 = arith.muli %arg0, %c1_i32 : i32
    %24 = arith.addi %23, %arg1 : i32
    %c8_i32 = arith.constant 8 : i32
    %25 = arith.muli %24, %c8_i32 : i32
    %26 = vector.broadcast %25 : i32 to vector<8x128xi32>
    %27 = arith.addi %26, %21 : vector<8x128xi32>
    %c128_i32 = arith.constant 128 : i32
    %28 = vector.broadcast %c128_i32 : i32 to vector<8x128xi32>
    %29 = arith.muli %27, %28 : vector<8x128xi32>
    %30 = arith.addi %29, %22 : vector<8x128xi32>
    %c300_i32 = arith.constant 300 : i32
    %31 = vector.broadcast %c300_i32 : i32 to vector<8x128xi32>
    %32 = arith.cmpi slt, %30, %31 : vector<8x128xi32>
    %cst_7 = arith.constant 0.000000e+00 : f32
    %33 = vector.broadcast %cst_7 : f32 to vector<8x128xf32>
    %34 = arith.select %32, %20, %33 : vector<8x128xi1>, vector<8x128xf32>
    %c0_8 = arith.constant 0 : index
    %c0_9 = arith.constant 0 : index
    %35 = vector.load %arg6[%c0_8, %c0_9] : memref<8x128xf32, #tpu.memory_space<vmem>>, vector<8x128xf32>
    %36 = arith.addf %35, %34 : vector<8x128xf32>
    %c0_10 = arith.constant 0 : index
    %c0_11 = arith.constant 0 : index
    %37 = vector.load %arg6[%c0_10, %c0_11] : memref<8x128xf32, #tpu.memory_space<vmem>>, vector<8x128xf32>
    tpu.vector_store %arg6[%c0_10, %c0_11], %36 {strides = array<i32>} : memref<8x128xf32, #tpu.memory_space<vmem>>, vector<8x128xf32>,
    return
  }
  func.func @transform_0(%arg0: i32, %arg1: i32, %arg2: memref<2xf32, #tpu.memory_space<smem>>) -> (i32, i32) {
    %c1_i32 = arith.constant 1 : i32
    %0 = arith.muli %arg0, %c1_i32 : i32
    %1 = arith.addi %0, %arg1 : i32
    %c0_i32 = arith.constant 0 : i32
    %c0_i32_0 = arith.constant 0 : i32
    return %1, %c0_i32 : i32, i32
  }
  func.func @transform_1(%arg0: i32, %arg1: i32, %arg2: memref<2xf32, #tpu.memory_space<smem>>) -> (i32, i32) {
    %c1_i32 = arith.constant 1 : i32
    %0 = arith.muli %arg0, %c1_i32 : i32
    %1 = arith.addi %0, %arg1 : i32
    %c0_i32 = arith.constant 0 : i32
    %c0_i32_0 = arith.constant 0 : i32
    return %1, %c0_i32 : i32, i32
  }
  func.func @transform_2(%arg0: i32, %arg1: i32, %arg2: memref<2xf32, #tpu.memory_space<smem>>) -> (i32, i32) {
    %c1_i32 = arith.constant 1 : i32
    %0 = arith.muli %arg0, %c1_i32 : i32
    %1 = arith.addi %0, %arg1 : i32
    %c0_i32 = arith.constant 0 : i32
    %c0_i32_0 = arith.constant 0 : i32
    return %1, %c0_i32 : i32, i32
  }
  func.func @transform_3(%arg0: i32, %arg1: i32, %arg2: memref<2xf32, #tpu.memory_space<smem>>) -> (i32, i32) {
    %c0_i32 = arith.constant 0 : i32
    %c0_i32_0 = arith.constant 0 : i32
    return %arg0, %c0_i32 : i32, i32
  }
}

</mosaic_0001>

<llo_original>
// kernel: tpu_custom_call.1
$region0: #{tpu_custom_call.1}
  #allocation0 [shape = 'u32[]', space=smem, size = 0x4, offset = 0x4, fixed_abs, tag = 'smem constant byte address 0x4 - core index']
  #allocation1 [shape = 'u32[72,128]{1,0:T(1,128)}', space=vmem, size = 0x9000, scoped, tag = 'internal scratch']
  #allocation2 [shape = 's32[1]{0}', space=sflag, size = 0x4, scoped, tag = 'scoped memory for tpu_custom_call.1']
  #allocation3 [shape = 'u8[512]{0}', space=smem, size = 0x200, scoped, tag = 'prefetched SMEM operand 0']
  %s0 = inlined_call_operand.hbm [shape: f32[2], index: 0, kind: input, shape index: {}]
  %s1 = inlined_call_operand.hbm [shape: f32[8,128], index: 1, kind: input, shape index: {}]
  %s2 = inlined_call_operand.hbm [shape: f32[8,128], index: 2, kind: input, shape index: {}]
  %s3 = inlined_call_operand.hbm [shape: f32[8,128], index: 3, kind: input, shape index: {}]
  %s4 = inlined_call_operand.hbm [shape: f32[8,128], index: 4, kind: output, shape index: {}]
  %s5 = sld [smem:[#allocation0]]
  $region38: #{tpu_custom_call.1} parent=0
    _
  %s7 = ssub.s32 1, %s5
  %s8 = scalar_select 0, %s7, %s5
  %s10 = sshll.u32 %s0, 4
  %s11 = int_to_ptr.hbm [resolvable:$true] %s10
  %13 = dma.hbm_to_smem %s11, 16, [#allocation3], [#allocation2]
  %15 = dma.done [#allocation2], 16
  %16 = sfence
  $region1: #{tpu_custom_call.1} parent=0
    #allocation4 [shape = 'u8[4096]{0}', space=vmem, size = 0x1000, scoped, tag = 'input window, operand 1, single buffered']
    #allocation5 [shape = 's32[1]{0}', space=sflag, size = 0x4, scoped, tag = 'scoped memory for tpu_custom_call.1']
    #allocation6 [shape = 's32[1]{0}', space=sflag, size = 0x4, scoped, tag = 'scoped memory for tpu_custom_call.1']
    #allocation7 [shape = 'u8[4096]{0}', space=vmem, size = 0x1000, scoped, tag = 'input window, operand 2, single buffered']
    #allocation8 [shape = 's32[1]{0}', space=sflag, size = 0x4, scoped, tag = 'scoped memory for tpu_custom_call.1']
    #allocation9 [shape = 'u8[4096]{0}', space=vmem, size = 0x1000, scoped, tag = 'input window, operand 3, single buffered']
    #allocation10 [shape = 'u8[4096]{0}', space=vmem, size = 0x1000, scoped, tag = 'output window, operand 0, single buffered']
    %17 = vsyncpa [#allocation5], 0
    %18 = vsyncpa [#allocation8], 0
    %19 = vsyncpa [#allocation6], 0
    // Predicated region
    $region2: #{tpu_custom_call.1} parent=1 // pred_check
      _
    $region3: #{tpu_custom_call.1} parent=1 // pred_check_branch
      %21 = sbr.rel (0) target = $region5
    $region4: #{tpu_custom_call.1} parent=1 // pred_region
      %s22 = sadd.s32 0, 0
      %24 = vsyncadd [#allocation5], 0
      %s25 = smul.addr %s22, 8
      %s26 = scalar_lea.hbm %s1, %s25
      %s28 = sshll.u32 %s26, 4
      %s29 = int_to_ptr.hbm [resolvable:$true] %s28
      %s30 = sshll.u32 [#allocation4], 4
      %s31 = int_to_ptr.vmem [resolvable:$true] %s30
      %33 = dma.hbm_to_vmem [thread:$0]  %s29, 128, %s31, [#allocation5]
    $region5: #{tpu_custom_call.1} parent=1 // pred_fallthru
      _
    // Predicated region
    $region6: #{tpu_custom_call.1} parent=1 // pred_check
      _
    $region7: #{tpu_custom_call.1} parent=1 // pred_check_branch
      %35 = sbr.rel (0) target = $region9
    $region8: #{tpu_custom_call.1} parent=1 // pred_region
      %s36 = sadd.s32 0, 0
      %38 = vsyncadd [#allocation8], 0
      %s39 = smul.addr %s36, 8
      %s40 = scalar_lea.hbm %s2, %s39
      %s42 = sshll.u32 %s40, 4
      %s43 = int_to_ptr.hbm [resolvable:$true] %s42
      %s44 = sshll.u32 [#allocation7], 4
      %s45 = int_to_ptr.vmem [resolvable:$true] %s44
      %47 = dma.hbm_to_vmem [thread:$0]  %s43, 128, %s45, [#allocation8]
    $region9: #{tpu_custom_call.1} parent=1 // pred_fallthru
      _
    // Predicated region
    $region10: #{tpu_custom_call.1} parent=1 // pred_check
      _
    $region11: #{tpu_custom_call.1} parent=1 // pred_check_branch
      %49 = sbr.rel (0) target = $region13
    $region12: #{tpu_custom_call.1} parent=1 // pred_region
      %s50 = sadd.s32 0, 0
      %52 = vsyncadd [#allocation8], 0
      %s53 = smul.addr %s50, 8
      %s54 = scalar_lea.hbm %s3, %s53
      %s56 = sshll.u32 %s54, 4
      %s57 = int_to_ptr.hbm [resolvable:$true] %s56
      %s58 = sshll.u32 [#allocation9], 4
      %s59 = int_to_ptr.vmem [resolvable:$true] %s58
      %61 = dma.hbm_to_vmem [thread:$0]  %s57, 128, %s59, [#allocation8]
    $region13: #{tpu_custom_call.1} parent=1 // pred_fallthru
      _
    // Predicated region
    $region14: #{tpu_custom_call.1} parent=1 // pred_check
      _
    $region15: #{tpu_custom_call.1} parent=1 // pred_check_branch
      %63 = sbr.rel (0) target = $region17
    $region16: #{tpu_custom_call.1} parent=1 // pred_region
      %65 = dma.done [#allocation5], 128
    $region17: #{tpu_custom_call.1} parent=1 // pred_fallthru
      _
    // Predicated region
    $region18: #{tpu_custom_call.1} parent=1 // pred_check
      _
    $region19: #{tpu_custom_call.1} parent=1 // pred_check_branch
      %67 = sbr.rel (0) target = $region21
    $region20: #{tpu_custom_call.1} parent=1 // pred_region
      %69 = dma.done [#allocation8], 128
    $region21: #{tpu_custom_call.1} parent=1 // pred_fallthru
      _
    // Predicated region
    $region22: #{tpu_custom_call.1} parent=1 // pred_check
      _
    $region23: #{tpu_custom_call.1} parent=1 // pred_check_branch
      %71 = sbr.rel (0) target = $region25
    $region24: #{tpu_custom_call.1} parent=1 // pred_region
      %73 = dma.done [#allocation8], 128
    $region25: #{tpu_custom_call.1} parent=1 // pred_fallthru
      _
    %s74 = sadd.s32 0, 0
    %s75 = sadd.s32 0, 0
    %s76 = sadd.s32 0, 0
    %p77 = scmp.eq.s32.totalorder 0, 0
    // Predicated region
    $region26: #{tpu_custom_call.1} parent=1 // pred_check
      %p78 = pneg %p77
    $region27: #{tpu_custom_call.1} parent=1 // pred_check_branch
      %80 = sbr.rel (%p78) target = $region29
    $region28: #{tpu_custom_call.1} parent=1 // pred_region
      %81 = vst [vmem:[#allocation10] sm:$0xff] 0.0
    $region29: #{tpu_custom_call.1} parent=1 // pred_fallthru
      _
    %s82 = sld [smem:[#allocation3]]
    %s83 = sld [smem:[#allocation3 + $0x1]]
    %v84 = vld [vmem:[#allocation4] sm:$0xff]
    %v85 = vld [vmem:[#allocation7] sm:$0xff]
    %v86 = vld [vmem:[#allocation9] sm:$0xff]
    %v87 = vadd.f32 %v86, 1.0
    %v88 = vlog2.pop %v87
    %v89 = vmul.f32 %v88, 0.6931472
    %v90 = vstv %s82
    %v91 = vsub.f32 %v89, %v90
    %v92 = vstv %s83
    %v93 = vmul.f32 %v91, %v92
    %v94 = vsub.f32 %v84, %v93
    %v95 = vlog2.pop %v85
    %v96 = vmul.f32 %v95, 0.6931472
    %v97 = vmul.f32 %v94, %v94
    %v98 = vrcp.pop %v85
    %v99 = vmul.f32 %v97, %v98
    %v100 = vadd.f32 %v96, %v99
    %v101 = vlaneseq
    %v102 = vshrl.u32 %v101, 7
    %v103 = vlaneseq
    %v104 = vand.u32 %v103, 127
    %s105 = sadd.s32 0, 0
    %s106 = smul.u32 %s105, 8
    %v107 = vstv %s106
    %v108 = vadd.s32 %v107, %v102
    %v109 = vmul.u32 %v108, 128
    %v110 = vadd.s32 %v109, %v104
    %vm111 = vcmp.lt.s32.totalorder %v110, 300
    %v112 = vsel %vm111, %v100, 0.0
    %v113 = vld [vmem:[#allocation10] sm:$0xff]
    %v114 = vadd.f32 %v113, %v112
    %115 = vst [vmem:[#allocation10] sm:$0xff] %v114
    // Predicated region
    $region30: #{tpu_custom_call.1} parent=1 // pred_check
      _
    $region31: #{tpu_custom_call.1} parent=1 // pred_check_branch
      %117 = sbr.rel (0) target = $region33
    $region32: #{tpu_custom_call.1} parent=1 // pred_region
      %119 = vsyncadd [#allocation6], 0
      %s121 = sshll.u32 [#allocation10], 4
      %s122 = int_to_ptr.vmem [resolvable:$true] %s121
      %s123 = sshll.u32 %s4, 4
      %s124 = int_to_ptr.hbm [resolvable:$true] %s123
      %126 = dma.vmem_to_hbm [thread:$0]  %s122, 128, %s124, [#allocation6]
    $region33: #{tpu_custom_call.1} parent=1 // pred_fallthru
      _
    // Predicated region
    $region34: #{tpu_custom_call.1} parent=1 // pred_check
      _
    $region35: #{tpu_custom_call.1} parent=1 // pred_check_branch
      %128 = sbr.rel (0) target = $region37
    $region36: #{tpu_custom_call.1} parent=1 // pred_region
      %130 = dma.done [#allocation6], 128
    $region37: #{tpu_custom_call.1} parent=1 // pred_fallthru
      _
    %131 = vsyncpa [#allocation5], 1
    %132 = vsyncpa [#allocation8], 1
    %133 = vsyncpa [#allocation6], 1

</llo_original>
